<compile_context>
chip_gen: v7x
topology: tpu7x:2x2x1
jax: 0.10.0
libtpu: 0.0.40
codegen_flags: <defaults>
</compile_context>

<pallas_src>
import functools

import jax
import jax.numpy as jnp
from jax import lax
from jax.experimental import pallas as pl
from jax.experimental.pallas import tpu as pltpu


# ----------------------------- small helpers ---------------------------------

def _round_up(v, m):
    return ((v + m - 1) // m) * m


def _tpu_vmem_capacity_bytes():
    """Physical VMEM per TensorCore; conservative (v7x) fallback if the query fails."""
    try:
        cap = int(pltpu.get_tpu_info().vmem_capacity_bytes)
        if cap > 0:
            return cap
    except Exception:
        pass
    return 64 * 1024 * 1024


def _num_tensorcores():
    """Best-effort TensorCore count (2 on v7x, 1 on v5e/v6e); defaults to 1."""
    try:
        info = pltpu.get_tpu_info()
        for attr in ("num_cores", "num_tensor_cores", "tensorcore_count",
                     "cores_per_chip", "num_cores_per_chip", "core_count"):
            v = getattr(info, attr, None)
            if isinstance(v, int) and v > 0:
                return v
    except Exception:
        pass
    try:
        v = getattr(jax.devices()[0], "num_cores", None)
        if isinstance(v, int) and v > 0:
            return v
    except Exception:
        pass
    return 1


# ----------------------------- Pallas kernel ---------------------------------

def _patch_embed_kernel(t_ref, w_ref, pos_ref, o_ref):
    # t_ref:   (bb, Nt, K)    bf16 tokens: row 0 = zeros (cls slot), rows 1..N = patches,
    #                         rows N+1.. = zero padding (only present when Nt > N+1).
    # w_ref:   (K, td)        bf16 conv weight reshaped as a matmul weight (true K, no pad).
    # pos_ref: (Nt, td)       f32  row 0 = cls_token + pos_embed[:, 0];
    #                              rows 1..N = pos_embed[:, 1:] + conv bias; rest zeros.
    # o_ref:   (bb, N+1, td)
    bb, nt, k = t_ref.shape
    td = w_ref.shape[1]
    n_out = o_ref.shape[1]

    # Fold the bb images into the MXU M dimension.  Layout-preserving reshape:
    # nt % 8 == 0 whenever bb > 1 (guaranteed by the wrapper).
    x = t_ref[...].reshape(bb * nt, k)
    y = jnp.dot(x, w_ref[...], preferred_element_type=jnp.float32)     # MXU, f32 acc
    y = y.reshape(bb, nt, td) + pos_ref[...][None, :, :]               # f32 VPU add

    # Single aligned full-block store; zero padding token rows (if any) are dropped here.
    o_ref[...] = y[:, :n_out, :].astype(o_ref.dtype)


# ----------------------------- wrapper ----------------------------------------

def patch_embed_pallas(x_nchw, conv_w, conv_b, cls_token, pos_embed, patch_size,
                       *, compute_dtype=jnp.bfloat16, out_dtype=None, target_m=256):
    """Pallas implementation of PatchEmbedTorch.forward (learnable posemb, cls pooling).

    x_nchw:    (B, 3, H, W)
    conv_w:    (D, 3, p, p)
    conv_b:    (D,)
    cls_token: (1, 1, D)
    pos_embed: (1, N + 1, D)
    returns:   (B, N + 1, D)   (dtype = out_dtype or x_nchw.dtype)
    """
    B, C, H, W = x_nchw.shape
    D = conv_w.shape[0]
    p = patch_size
    Hp, Wp = H // p, W // p
    N = Hp * Wp
    K = C * p * p
    out_dtype = x_nchw.dtype if out_dtype is None else out_dtype

    n_tokens = N + 1                             # cls + patch tokens
    n_tok_aligned = _round_up(n_tokens, 8)

    # --- grid sizing: fold batches into ~target_m MXU rows, but keep >= num_cores grid
    #     steps on multi-TensorCore parts (v7x) so the "parallel" axis can shard. ------
    ncores = _num_tensorcores()
    bb_cap_cores = max(1, B // ncores) if B >= ncores else B
    bb = max(1, min(B, max(1, target_m // n_tok_aligned), bb_cap_cores))
    while B % bb:
        bb -= 1
    # Tokens per image inside the kernel block: multiple of 8 only when folding (bb > 1),
    # so the in-kernel reshape is layout-preserving; otherwise keep the exact N+1.
    n_tok = n_tok_aligned if bb > 1 else n_tokens

    # --- im2col (patch extraction) + token assembly. -------------------------------
    # (B, C, Hp, p, Wp, p) -> (B, Hp, Wp, C, p, p) -> (B, N, K), K in (c, kh, kw) order.
    # A zero row is prepended per image (the cls slot) and zero rows appended for the
    # token alignment padding; the pad + cast fuse with the transpose producer.
    patches = x_nchw.reshape(B, C, Hp, p, Wp, p).transpose(0, 2, 4, 1, 3, 5).reshape(B, N, K)
    tokens = jnp.pad(patches, ((0, 0), (1, n_tok - n_tokens), (0, 0))).astype(compute_dtype)
    w_mat = conv_w.reshape(D, K).T.astype(compute_dtype)                       # (K, D)

    # Positional table: row 0 = cls_token + pos_embed[:, 0] (no conv bias!), patch rows
    # fold the conv bias in, padding rows are zeros (computed then dropped in-kernel).
    cls_row = (cls_token[0] + pos_embed[0, 0:1, :]).astype(jnp.float32)        # (1, D)
    patch_pos = (pos_embed[0, 1:, :] + conv_b[None, :]).astype(jnp.float32)    # (N, D)
    parts = [cls_row, patch_pos]
    if n_tok > n_tokens:
        parts.append(jnp.zeros((n_tok - n_tokens, D), jnp.float32))
    pos_full = jnp.concatenate(parts, axis=0)                                  # (n_tok, D)

    # --- per-generation VMEM budget and optional D tiling. --------------------------
    c_esz = jnp.dtype(compute_dtype).itemsize
    o_esz = jnp.dtype(out_dtype).itemsize
    vmem_cap = _tpu_vmem_capacity_bytes()
    budget = (3 * vmem_cap) // 4             # ~48 MiB on v7x, ~96 MiB on v5e/v6e

    def footprint(td):
        td_l = _round_up(td, 128)
        k_l = _round_up(K, 128)
        nt_s = _round_up(n_tok, 8)
        no_s = _round_up(n_tokens, 8)
        return (2 * bb * nt_s * k_l * c_esz          # token tile (double-buffered)
                + 2 * _round_up(K, 8) * td_l * c_esz  # weight (constant index; 2nd buf idle)
                + 2 * nt_s * td_l * 4                 # pos table (constant index)
                + 2 * bb * no_s * td_l * o_esz        # output tile
                + bb * nt_s * td_l * 4)               # f32 matmul result

    tile_d = D
    if footprint(tile_d) > budget:
        for cand in (512, 384, 256, 128):
            if cand < D and D % cand == 0 and footprint(cand) <= budget:
                tile_d = cand
                break
    n_d_tiles = D // tile_d
    vmem_limit = int(min(budget, max(8 * 1024 * 1024, 2 * footprint(tile_d))))

    cost = pl.CostEstimate(
        flops=int(2 * B * n_tok * K * D),
        transcendentals=0,
        bytes_accessed=int(tokens.size * c_esz + w_mat.size * c_esz
                           + pos_full.size * 4 + B * n_tokens * D * o_esz),
    )

    out = pl.pallas_call(
        _patch_embed_kernel,
        out_shape=jax.ShapeDtypeStruct((B, n_tokens, D), out_dtype),
        grid=(B // bb, n_d_tiles),
        in_specs=[
            pl.BlockSpec((bb, n_tok, K), lambda i, j: (i, 0, 0)),
            pl.BlockSpec((K, tile_d), lambda i, j: (0, j)),
            pl.BlockSpec((n_tok, tile_d), lambda i, j: (0, j)),
        ],
        out_specs=pl.BlockSpec((bb, n_tokens, tile_d), lambda i, j: (i, 0, j)),
        compiler_params=pltpu.CompilerParams(
            dimension_semantics=("parallel", "parallel"),
            vmem_limit_bytes=vmem_limit,
            allow_input_fusion=[True, True, True],
        ),
        cost_estimate=cost,
    )(tokens, w_mat, pos_full)
    return out


# ----------------------------- reference (pure JAX) ---------------------------

def patch_embed_reference(x_nchw, conv_w, conv_b, cls_token, pos_embed, patch_size):
    B = x_nchw.shape[0]
    D = conv_w.shape[0]
    y = lax.conv_general_dilated(
        x_nchw.astype(jnp.float32), conv_w.astype(jnp.float32),
        window_strides=(patch_size, patch_size), padding="VALID",
        dimension_numbers=("NCHW", "OIHW", "NCHW"),
    ) + conv_b.reshape(1, D, 1, 1)
    y = y.reshape(B, D, -1).transpose(0, 2, 1)          # (B, N, D)
    cls = jnp.broadcast_to(cls_token, (B, 1, D))
    y = jnp.concatenate([cls, y], axis=1) + pos_embed   # (B, N+1, D)
    return y


# ----------------------------- main --------------------------------------------

if __name__ == "__main__":
    # Small ViT-ish config: image 16x16, patch 4 -> 4x4 = 16 patches, dim 128.
    B, C, IMG, P, DIM = 2, 3, 16, 4, 128
    N = (IMG // P) ** 2

    key = jax.random.PRNGKey(0)
    k_x, k_w, k_b, k_cls, k_pos = jax.random.split(key, 5)

    x = jax.random.normal(k_x, (B, C, IMG, IMG), dtype=jnp.float32)
    conv_w = jax.random.normal(k_w, (DIM, C, P, P), dtype=jnp.float32) * 0.02
    conv_b = jax.random.normal(k_b, (DIM,), dtype=jnp.float32) * 0.02
    cls_token = jax.random.normal(k_cls, (1, 1, DIM), dtype=jnp.float32) * 0.02
    pos_embed = jax.random.normal(k_pos, (1, N + 1, DIM), dtype=jnp.float32) * 0.02

    fn = jax.jit(functools.partial(patch_embed_pallas, patch_size=P))
    out = jax.block_until_ready(fn(x, conv_w, conv_b, cls_token, pos_embed))

    ref = patch_embed_reference(x, conv_w, conv_b, cls_token, pos_embed, P)
    assert out.shape == (B, N + 1, DIM), out.shape
    # bf16 MXU inputs with f32 accumulation: tolerance loosened vs the f32 conv reference.
    max_err = float(jnp.max(jnp.abs(out - ref)))
    assert jnp.allclose(out, ref, atol=2e-2, rtol=2e-2), max_err

    print("KERNEL_OK")
</pallas_src>

<mosaic_0001>
module attributes {stable_mosaic.version = 11 : i64} {
  func.func @_patch_embed_kernel(%arg0: i32, %arg1: i32, %arg2: memref<2x24x48xbf16, #tpu.memory_space<vmem>>, %arg3: memref<48x128xbf16, #tpu.memory_space<vmem>>, %arg4: memref<24x128xf32, #tpu.memory_space<vmem>>, %arg5: memref<2x17x128xf32, #tpu.memory_space<vmem>>) attributes {dimension_semantics = [#tpu.dimension_semantics<parallel>, #tpu.dimension_semantics<parallel>], iteration_bounds = array<i64: 1, 1>, scalar_prefetch = 0 : i64, scratch_operands = 0 : i64, tpu.core_type = #tpu.core_type<tc>, window_params = [{transform_indices = @transform_0, window_bounds = array<i64: 2, 24, 48>}, {transform_indices = @transform_1, window_bounds = array<i64: 48, 128>}, {transform_indices = @transform_2, window_bounds = array<i64: 24, 128>}, {transform_indices = @transform_3, window_bounds = array<i64: 2, 17, 128>}]} {
    %c0 = arith.constant 0 : index
    %c0_0 = arith.constant 0 : index
    %c0_1 = arith.constant 0 : index
    %0 = vector.load %arg2[%c0, %c0_0, %c0_1] : memref<2x24x48xbf16, #tpu.memory_space<vmem>>, vector<2x24x48xbf16>
    %1 = vector.shape_cast %0 : vector<2x24x48xbf16> to vector<48x48xbf16>
    %c0_2 = arith.constant 0 : index
    %c0_3 = arith.constant 0 : index
    %2 = vector.load %arg3[%c0_2, %c0_3] : memref<48x128xbf16, #tpu.memory_space<vmem>>, vector<48x128xbf16>
    %cst = arith.constant dense<0.000000e+00> : vector<48x128xf32>
    %3 = tpu.matmul %1, %2, %cst {dimension_numbers = #tpu.dot_dimension_numbers<[1], [0], [0], [1], [0, 0, 1, 1], [], []>} : vector<48x48xbf16>, vector<48x128xbf16>, vector<48x128xf32> -> vector<48x128xf32>
    %4 = vector.shape_cast %3 : vector<48x128xf32> to vector<2x24x128xf32>
    %c0_4 = arith.constant 0 : index
    %c0_5 = arith.constant 0 : index
    %5 = vector.load %arg4[%c0_4, %c0_5] : memref<24x128xf32, #tpu.memory_space<vmem>>, vector<24x128xf32>
    %6 = vector.shape_cast %5 : vector<24x128xf32> to vector<1x24x128xf32>
    %7 = vector.broadcast %6 : vector<1x24x128xf32> to vector<2x24x128xf32>
    %8 = arith.addf %4, %7 : vector<2x24x128xf32>
    %9 = vector.extract_strided_slice %8 {offsets = [0, 0, 0], sizes = [2, 17, 128], strides = [1, 1, 1]} : vector<2x24x128xf32> to vector<2x17x128xf32>
    %c0_6 = arith.constant 0 : index
    %c0_7 = arith.constant 0 : index
    %c0_8 = arith.constant 0 : index
    %10 = vector.load %arg5[%c0_6, %c0_7, %c0_8] : memref<2x17x128xf32, #tpu.memory_space<vmem>>, vector<2x17x128xf32>
    tpu.vector_store %arg5[%c0_6, %c0_7, %c0_8], %9 {strides = array<i32>} : memref<2x17x128xf32, #tpu.memory_space<vmem>>, vector<2x17x128xf32>,
    return
  }
  func.func @transform_0(%arg0: i32, %arg1: i32) -> (i32, i32, i32) {
    %c0_i32 = arith.constant 0 : i32
    %c0_i32_0 = arith.constant 0 : i32
    %c0_i32_1 = arith.constant 0 : i32
    return %arg0, %c0_i32, %c0_i32_0 : i32, i32, i32
  }
  func.func @transform_1(%arg0: i32, %arg1: i32) -> (i32, i32) {
    %c0_i32 = arith.constant 0 : i32
    %c0_i32_0 = arith.constant 0 : i32
    return %c0_i32, %arg1 : i32, i32
  }
  func.func @transform_2(%arg0: i32, %arg1: i32) -> (i32, i32) {
    %c0_i32 = arith.constant 0 : i32
    %c0_i32_0 = arith.constant 0 : i32
    return %c0_i32, %arg1 : i32, i32
  }
  func.func @transform_3(%arg0: i32, %arg1: i32) -> (i32, i32, i32) {
    %c0_i32 = arith.constant 0 : i32
    %c0_i32_0 = arith.constant 0 : i32
    return %arg0, %c0_i32, %arg1 : i32, i32, i32
  }
}

</mosaic_0001>

<llo_original>
// kernel: patch_embed_pallas.2
$region0: #{patch_embed_pallas.2}
  #allocation0 [shape = 'u32[]', space=smem, size = 0x4, offset = 0x4, fixed_abs, tag = 'smem constant byte address 0x4 - core index']
  #allocation1 [shape = 'u32[144,128]{1,0:T(1,128)}', space=vmem, size = 0x12000, scoped, tag = 'internal scratch']
  #allocation2 [shape = 'u32[2048]{0}', space=vmem, size = 0x2000, scoped, tag = 'scoped memory for patch_embed_pallas.2']
  #allocation3 [shape = 'u32[2048]{0}', space=vmem, size = 0x2000, scoped, tag = 'scoped memory for patch_embed_pallas.2']
  #allocation4 [shape = 'u32[2048]{0}', space=vmem, size = 0x2000, scoped, tag = 'scoped memory for patch_embed_pallas.2']
  #allocation5 [shape = 'u32[2048]{0}', space=vmem, size = 0x2000, scoped, tag = 'scoped memory for patch_embed_pallas.2']
  #allocation6 [shape = 'u32[2048]{0}', space=vmem, size = 0x2000, scoped, tag = 'scoped memory for patch_embed_pallas.2']
  #allocation7 [shape = 'u32[2048]{0}', space=vmem, size = 0x2000, scoped, tag = 'scoped memory for patch_embed_pallas.2']
  #allocation8 [shape = 'u32[2048]{0}', space=vmem, size = 0x2000, scoped, tag = 'scoped memory for patch_embed_pallas.2']
  #allocation9 [shape = 'u32[2048]{0}', space=vmem, size = 0x2000, scoped, tag = 'scoped memory for patch_embed_pallas.2']
  #allocation10 [shape = 'u32[2048]{0}', space=vmem, size = 0x2000, scoped, tag = 'scoped memory for patch_embed_pallas.2']
  #allocation11 [shape = 'u32[2048]{0}', space=vmem, size = 0x2000, scoped, tag = 'scoped memory for patch_embed_pallas.2']
  #allocation12 [shape = 'u32[2048]{0}', space=vmem, size = 0x2000, scoped, tag = 'scoped memory for patch_embed_pallas.2']
  #allocation13 [shape = 'u32[2048]{0}', space=vmem, size = 0x2000, scoped, tag = 'scoped memory for patch_embed_pallas.2']
  #allocation14 [shape = 'u32[2048]{0}', space=vmem, size = 0x2000, scoped, tag = 'scoped memory for patch_embed_pallas.2']
  #allocation15 [shape = 'u32[2048]{0}', space=vmem, size = 0x2000, scoped, tag = 'scoped memory for patch_embed_pallas.2']
  #allocation16 [shape = 'u32[2048]{0}', space=vmem, size = 0x2000, scoped, tag = 'scoped memory for patch_embed_pallas.2']
  %s0 = inlined_call_operand.vmem [shape: bf16[48,128], index: 0, kind: input, shape index: {}]
  %s1 = inlined_call_operand.vmem [shape: f32[16,128], index: 1, kind: input, shape index: {}]
  %s2 = inlined_call_operand.<no memory space> [shape: f32[], index: 2, kind: input, shape index: {}]
  %s3 = inlined_call_operand.vmem [shape: f32[1,128], index: 3, kind: input, shape index: {}]
  %s4 = inlined_call_operand.vmem [shape: bf16[2,16,48], index: 4, kind: input, shape index: {}]
  %s5 = inlined_call_operand.<no memory space> [shape: bf16[], index: 5, kind: input, shape index: {}]
  %s6 = inlined_call_operand.vmem [shape: f32[24], index: 6, kind: input, shape index: {}]
  %s7 = inlined_call_operand.vmem [shape: f32[2,17,128], index: 7, kind: output, shape index: {}]
  %s8 = sld [smem:[#allocation0]]
  $region30: #{patch_embed_pallas.2} parent=0
    _
  %s10 = ssub.s32 1, %s8
  %s11 = scalar_select 0, %s10, %s8
  %v12 = vstv %s5
  %v13 = vunpack.i.l.bf16 %v12
  %v15 = vunpack.i.h.bf16 %v12
  %v17 = vstv %s2
  %v18 = vstv %s2
  $region1: #{patch_embed_pallas.2} parent=0
    #allocation17 [shape = 'u8[12288]{0}', space=vmem, size = 0x3000, dematerialized = true, scoped, tag = 'FusionAdapter Buffer %fusion.5 = bf16[2,24,48]{2,1,0:T(8,128)(2,1)} fusion(%param_4.4, %param_5.3), kind=kLoop, calls=%fused_computation.6.clone, metadata={op_name="jit(patch_embed_pallas)/jit(_pad)/pad" stack_frame_id=9}']
    #allocation18 [shape = 'u8[12288]{0}', space=vmem, size = 0x3000, dematerialized = true, scoped, tag = 'FusionAdapter Buffer %fusion.1 = f32[24,128]{1,0:T(8,128)} fusion(%param_1.12, %param_2.7, %param_3.6, %param_6.1), kind=kLoop, calls=%fused_computation.2.clone, metadata={op_name="jit(patch_embed_pallas)/concatenate" stack_frame_id=16}']
    // Predicated region
    $region2: #{patch_embed_pallas.2} parent=1 // pred_check
      _
    $region3: #{patch_embed_pallas.2} parent=1 // pred_check_branch
      %20 = sbr.rel (0) target = $region5
    $region4: #{patch_embed_pallas.2} parent=1 // pred_region
      %s21 = scalar_lea.vmem %s4, 4294967292
    $region5: #{patch_embed_pallas.2} parent=1 // pred_fallthru
      _
    // Predicated region
    $region6: #{patch_embed_pallas.2} parent=1 // pred_check
      _
    $region7: #{patch_embed_pallas.2} parent=1 // pred_check_branch
      %23 = sbr.rel (0) target = $region9
    $region8: #{patch_embed_pallas.2} parent=1 // pred_region
      _
    $region9: #{patch_embed_pallas.2} parent=1 // pred_fallthru
      _
    // Predicated region
    $region10: #{patch_embed_pallas.2} parent=1 // pred_check
      _
    $region11: #{patch_embed_pallas.2} parent=1 // pred_check_branch
      %25 = sbr.rel (0) target = $region13
    $region12: #{patch_embed_pallas.2} parent=1 // pred_region
      %s26 = scalar_lea.vmem %s1, 4294967288
    $region13: #{patch_embed_pallas.2} parent=1 // pred_fallthru
      _
    // Predicated region
    $region14: #{patch_embed_pallas.2} parent=1 // pred_check
      _
    $region15: #{patch_embed_pallas.2} parent=1 // pred_check_branch
      %28 = sbr.rel (0) target = $region17
    $region16: #{patch_embed_pallas.2} parent=1 // pred_region
      _
    $region17: #{patch_embed_pallas.2} parent=1 // pred_fallthru
      _
    // Predicated region
    $region18: #{patch_embed_pallas.2} parent=1 // pred_check
      _
    $region19: #{patch_embed_pallas.2} parent=1 // pred_check_branch
      %30 = sbr.rel (0) target = $region21
    $region20: #{patch_embed_pallas.2} parent=1 // pred_region
      _
    $region21: #{patch_embed_pallas.2} parent=1 // pred_fallthru
      _
    %s31 = scalar_lea.vmem %s4, 4294967292
    %s32 = scalar_lea.vmem %s1, 4294967288
    %s33 = scalar_lea.vmem %s4, 4294967292
    %s34 = scalar_lea.vmem %s1, 4294967288
    %s36 = sand.u32 0, 85
    %s37 = sshrl.u32 %s36, 1
    %s38 = sor.u32 %s36, %s37
    %s39 = sand.u32 51, %s38
    %s40 = sshrl.u32 %s39, 2
    %s41 = sor.u32 %s39, %s40
    %s42 = sand.u32 15, %s41
    %v43 = vld [vmem:[%s33] sm:%s42]
    %v44 = vunpack.c.l.bf16 %v43
    %v45 = vunpack.c.h.bf16 %v43
    %s46 = scalar_lea.vmem %s33, 4
    %s48 = sor.u32 255, 127
    %s49 = sand.u32 %s48, 85
    %s50 = sshrl.u32 %s49, 1
    %s51 = sor.u32 %s49, %s50
    %s52 = sand.u32 51, %s51
    %s53 = sshrl.u32 %s52, 2
    %s54 = sor.u32 %s52, %s53
    %s55 = sand.u32 15, %s54
    %v56 = vld [vmem:[%s46] sm:%s55]
    %v57 = vunpack.c.l.bf16 %v56
    %v58 = vunpack.c.h.bf16 %v56
    %v59 = vlaneseq
    %v60 = vand.u32 %v59, 127
    %vm62 = vcmp.lt.s32.totalorder %v60, 48
    %v63 = vsel %vm62, %v57, %v13
    %vm64 = vcmask 1046528
    %v65 = vsel %vm64, %v63, %v13
    %v66 = vrot.slane %v65, 7
    %v67 = vpack.c.bf16 0.0, %v66
    %69 = vst [vmem:[#allocation17] sm:$0xf] %v67
    %s70 = scalar_lea.vmem %s33, 8
    %s72 = sor.u32 255, 127
    %s73 = sand.u32 %s72, 85
    %s74 = sshrl.u32 %s73, 1
    %s75 = sor.u32 %s73, %s74
    %s76 = sand.u32 51, %s75
    %s77 = sshrl.u32 %s76, 2
    %s78 = sor.u32 %s76, %s77
    %s79 = sand.u32 15, %s78
    %v80 = vld [vmem:[%s70] sm:%s79]
    %v81 = vunpack.c.l.bf16 %v80
    %v82 = vunpack.c.h.bf16 %v80
    %v83 = vlaneseq
    %v84 = vand.u32 %v83, 127
    %vm86 = vcmp.lt.s32.totalorder %v84, 48
    %v87 = vsel %vm86, %v81, %v13
    %vm88 = vcmask 1046528
    %v89 = vsel %vm88, %v87, %v63
    %v90 = vrot.slane %v89, 7
    %s91 = scalar_lea.vmem [#allocation17], 4
    %v92 = vpack.c.bf16 0.0, %v90
    %94 = vst [vmem:[%s91] sm:$0xf] %v92
    %vm95 = vcmask 1046528
    %v96 = vsel %vm95, %v13, %v87
    %v97 = vrot.slane %v96, 7
    %s98 = scalar_lea.vmem [#allocation17], 8
    %v99 = vpack.c.bf16 0.0, %v97
    %101 = vst [vmem:[%s98] sm:$0xf] %v99
    %s102 = scalar_lea.vmem %s33, 8
    %s104 = sand.u32 0, 85
    %s105 = sshrl.u32 %s104, 1
    %s106 = sor.u32 %s104, %s105
    %s107 = sand.u32 51, %s106
    %s108 = sshrl.u32 %s107, 2
    %s109 = sor.u32 %s107, %s108
    %s110 = sand.u32 15, %s109
    %v111 = vld [vmem:[%s102] sm:%s110]
    %v112 = vunpack.c.l.bf16 %v111
    %v113 = vunpack.c.h.bf16 %v111
    %s114 = scalar_lea.vmem %s33, 12
    %s116 = sor.u32 255, 127
    %s117 = sand.u32 %s116, 85
    %s118 = sshrl.u32 %s117, 1
    %s119 = sor.u32 %s117, %s118
    %s120 = sand.u32 51, %s119
    %s121 = sshrl.u32 %s120, 2
    %s122 = sor.u32 %s120, %s121
    %s123 = sand.u32 15, %s122
    %v124 = vld [vmem:[%s114] sm:%s123]
    %v125 = vunpack.c.l.bf16 %v124
    %v126 = vunpack.c.h.bf16 %v124
    %v127 = vlaneseq
    %v128 = vand.u32 %v127, 127
    %vm130 = vcmp.lt.s32.totalorder %v128, 48
    %v131 = vsel %vm130, %v125, %v13
    %vm132 = vcmask 1046528
    %v133 = vsel %vm132, %v131, %v13
    %v134 = vrot.slane %v133, 7
    %s135 = scalar_lea.vmem [#allocation17], 12
    %v136 = vpack.c.bf16 0.0, %v134
    %138 = vst [vmem:[%s135] sm:$0xf] %v136
    %s139 = scalar_lea.vmem %s33, 16
    %s141 = sor.u32 255, 127
    %s142 = sand.u32 %s141, 85
    %s143 = sshrl.u32 %s142, 1
    %s144 = sor.u32 %s142, %s143
    %s145 = sand.u32 51, %s144
    %s146 = sshrl.u32 %s145, 2
    %s147 = sor.u32 %s145, %s146
    %s148 = sand.u32 15, %s147
    %v149 = vld [vmem:[%s139] sm:%s148]
    %v150 = vunpack.c.l.bf16 %v149
    %v151 = vunpack.c.h.bf16 %v149
    %v152 = vlaneseq
    %v153 = vand.u32 %v152, 127
    %vm155 = vcmp.lt.s32.totalorder %v153, 48
    %v156 = vsel %vm155, %v150, %v13
    %vm157 = vcmask 1046528
    %v158 = vsel %vm157, %v156, %v131
    %v159 = vrot.slane %v158, 7
    %s160 = scalar_lea.vmem [#allocation17], 16
    %v161 = vpack.c.bf16 0.0, %v159
    %163 = vst [vmem:[%s160] sm:$0xf] %v161
    %vm164 = vcmask 1046528
    %v165 = vsel %vm164, %v13, %v156
    %v166 = vrot.slane %v165, 7
    %s167 = scalar_lea.vmem [#allocation17], 20
    %v168 = vpack.c.bf16 0.0, %v166
    %170 = vst [vmem:[%s167] sm:$0xf] %v168
    %s171 = scalar_lea.vmem %s34, 8
    %v172 = vld [vmem:[%s171] sm:$0xff]
    %vm173 = vcmask 1046528
    %v174 = vsel %vm173, %v172, %v17
    %v175 = vrot.slane %v174, 7
    %v176 = vld [vmem:[%s3] sm:$0x1]
    %v177 = vlaneseq
    %v178 = vshrl.u32 %v177, 7
    %vm180 = vcmp.lt.s32.totalorder %v178, 1
    %v181 = vsel %vm180, %v176, %v18
    %v182 = vld [vmem:[%s6] ss:$0 sm:$0xff]
    %184 = vbcast.lane.b32.xlu0 %v182, 256
    %v185 = vpop.permute.xlu0 %184
    %186 = xla_tuple %v181, %v175
    %187 = xla_tuple %186
    %v188 = vmax.f32 %v181, %v175
    %189 = xla_tuple %v188
    %190 = xla_tuple %v188, %v185
    %191 = xla_tuple %190
    %v192 = vmax.f32 %v188, %v185
    %193 = xla_tuple %v192
    %195 = vst [vmem:[#allocation18] sm:$0xff] %v192
    %s196 = scalar_lea.vmem %s34, 16
    %v197 = vld [vmem:[%s196] sm:$0xff]
    %vm198 = vcmask 1046528
    %v199 = vsel %vm198, %v197, %v172
    %v200 = vrot.slane %v199, 7
    %v201 = vld [vmem:[%s6] ss:$0 sm:$0xff]
    %s203 = sor.u32 256, 8
    %204 = vbcast.lane.b32.xlu0 %v201, %s203
    %v205 = vpop.permute.xlu0 %204
    %206 = xla_tuple %v18, %v200
    %207 = xla_tuple %206
    %v208 = vmax.f32 %v18, %v200
    %209 = xla_tuple %v208
    %210 = xla_tuple %v208, %v205
    %211 = xla_tuple %210
    %v212 = vmax.f32 %v208, %v205
    %213 = xla_tuple %v212
    %s214 = scalar_lea.vmem [#allocation18], 8
    %216 = vst [vmem:[%s214] sm:$0xff] %v212
    %vm217 = vcmask 1046528
    %v218 = vsel %vm217, %v17, %v197
    %v219 = vrot.slane %v218, 7
    %v220 = vld [vmem:[%s6] ss:$0 sm:$0xff]
    %s222 = sor.u32 256, 16
    %223 = vbcast.lane.b32.xlu0 %v220, %s222
    %v224 = vpop.permute.xlu0 %223
    %225 = xla_tuple %v18, %v219
    %226 = xla_tuple %225
    %v227 = vmax.f32 %v18, %v219
    %228 = xla_tuple %v227
    %229 = xla_tuple %v227, %v224
    %230 = xla_tuple %229
    %v231 = vmax.f32 %v227, %v224
    %232 = xla_tuple %v231
    %s233 = scalar_lea.vmem [#allocation18], 16
    %235 = vst [vmem:[%s233] sm:$0xff] %v231
    %v237 = vld [vmem:[#allocation17] sm:$0xf]
    %v238 = vld [vmem:[#allocation17 + $0x4] sm:$0xf]
    %v239 = vld [vmem:[#allocation17 + $0x8] sm:$0xf]
    %v240 = vld [vmem:[#allocation17 + $0xc] sm:$0xf]
    %v241 = vld [vmem:[#allocation17 + $0x10] sm:$0xf]
    %v242 = vld [vmem:[#allocation17 + $0x14] sm:$0xf]
    %v243 = vld [vmem:[%s0] sm:$0xf]
    %v244 = vld [vmem:[%s0 + $0x4] sm:$0xf]
    %v245 = vld [vmem:[%s0 + $0x8] sm:$0xf]
    %v246 = vld [vmem:[%s0 + $0xc] sm:$0xf]
    %v247 = vld [vmem:[%s0 + $0x10] sm:$0xf]
    %v248 = vld [vmem:[%s0 + $0x14] sm:$0xf]
    %v255 = vunpack.c.l.b16 %v237
    %v256 = vunpack.c.l.b16 %v238
    %v257 = vunpack.c.l.b16 %v239
    %v258 = vunpack.c.l.b16 %v240
    %v259 = vunpack.c.l.b16 %v241
    %v260 = vunpack.c.l.b16 %v242
    %v261 = vpack.c.b16 %v256, %v255
    %v262 = vpack.c.b16 %v258, %v257
    %v263 = vpack.c.b16 %v260, %v259
    %v270 = vunpack.c.l.b16 %v243
    %v271 = vunpack.c.l.b16 %v244
    %v272 = vunpack.c.l.b16 %v245
    %v273 = vunpack.c.l.b16 %v246
    %v274 = vunpack.c.l.b16 %v247
    %v275 = vunpack.c.l.b16 %v248
    %v276 = vpack.c.b16 %v271, %v270
    %v277 = vpack.c.b16 %v273, %v272
    %v278 = vpack.c.b16 %v275, %v274
    %vm282 = vcmask 392192
    %v284 = vsel %vm282, %v261, 0
    %v287 = vsel %vm282, %v262, 0
    %v290 = vsel %vm282, %v263, 0
    %292 = vmatprep.subr.bf16.mxu0 0
    %293 = vmatpush1.bf16.msra.mxu0 %v276
    %294 = vmatprep.subr.bf16.mxu0 0
    %295 = vmatpush1.bf16.msra.mxu0 %v277
    %296 = vmatprep.subr.bf16.mxu0 0
    %297 = vmatpush1.bf16.msra.mxu0 %v278
    %298 = vmatprep.subr.bf16.mxu0 0
    %299 = vmatpush1.bf16.msra.mxu0 0
    %300 = vmatprep.subr.bf16.mxu0 0
    %301 = vmatpush1.bf16.msra.mxu0 0
    %302 = vmatprep.subr.bf16.mxu0 0
    %303 = vmatpush1.bf16.msra.mxu0 0
    %304 = vmatprep.subr.bf16.mxu0 0
    %305 = vmatpush1.bf16.msra.mxu0 0
    %306 = vmatprep.subr.bf16.mxu0 0
    %307 = vmatpush1.bf16.msra.mxu0 0
    %308 = vmatprep.subr.bf16.mxu0 0
    %309 = vmatpush1.bf16.msra.mxu0 0
    %310 = vmatprep.subr.bf16.mxu0 0
    %311 = vmatpush1.bf16.msra.mxu0 0
    %312 = vmatprep.subr.bf16.mxu0 0
    %313 = vmatpush1.bf16.msra.mxu0 0
    %314 = vmatprep.subr.bf16.mxu0 0
    %315 = vmatpush1.bf16.msra.mxu0 0
    %316 = vmatprep.subr.bf16.mxu0 0
    %317 = vmatpush1.bf16.msra.mxu0 0
    %318 = vmatprep.subr.bf16.mxu0 0
    %319 = vmatpush1.bf16.msra.mxu0 0
    %320 = vmatprep.subr.bf16.mxu0 0
    %321 = vmatpush1.bf16.msra.mxu0 0
    %322 = vmatprep.subr.bf16.mxu0 0
    %323 = vmatpush1.bf16.msra.mxu0 0
    %324 = vmatprep.mubr.bf16.mxu0 0
    %325 = vmatmul.mubr.bf16.gmra.mrb[0].mxu0 %v284
    %v326 = vpop.f32.mrb[0].mxu0
    %v327 = vadd.f32 0.0, %v326
    %v328 = vpop.f32.mrb[0].mxu0
    %v329 = vpop.f32.mrb[0].mxu0
    %v330 = vadd.f32 0.0, %v329
    %v331 = vpop.f32.mrb[0].mxu0
    %332 = vmatprep.mubr.bf16.mxu0 0
    %333 = vmatmul.mubr.bf16.gmra.mrb[0].mxu0 %v287
    %v334 = vpop.f32.mrb[0].mxu0
    %v335 = vadd.f32 0.0, %v334
    %v336 = vpop.f32.mrb[0].mxu0
    %v337 = vpop.f32.mrb[0].mxu0
    %v338 = vadd.f32 0.0, %v337
    %v339 = vpop.f32.mrb[0].mxu0
    %340 = vmatprep.mubr.bf16.mxu0 0
    %341 = vmatmul.mubr.bf16.gmra.mrb[0].mxu0 %v290
    %v342 = vpop.f32.mrb[0].mxu0
    %v343 = vadd.f32 0.0, %v342
    %v344 = vpop.f32.mrb[0].mxu0
    %v345 = vpop.f32.mrb[0].mxu0
    %v346 = vadd.f32 0.0, %v345
    %v347 = vpop.f32.mrb[0].mxu0
    %348 = vdwg.mxu0
    %v349 = vld [vmem:[#allocation18] sm:$0xff]
    %v350 = vld [vmem:[#allocation18 + $0x8] sm:$0xff]
    %v351 = vld [vmem:[#allocation18 + $0x10] sm:$0xff]
    %v352 = vadd.f32 %v327, %v349
    %v353 = vadd.f32 %v330, %v350
    %v354 = vadd.f32 %v335, %v351
    %v355 = vadd.f32 %v338, %v349
    %v356 = vadd.f32 %v343, %v350
    %v357 = vadd.f32 %v346, %v351
    %358 = vst [vmem:[%s7] sm:$0xff] %v352
    %359 = vst [vmem:[%s7 + $0x8] sm:$0xff] %v353
    %360 = vst [vmem:[%s7 + $0x10] sm:$0x1] %v354
    %361 = vst [vmem:[%s7 + $0x18] sm:$0xff] %v355
    %362 = vst [vmem:[%s7 + $0x20] sm:$0xff] %v356
    %363 = vst [vmem:[%s7 + $0x28] sm:$0x1] %v357
    // Predicated region
    $region22: #{patch_embed_pallas.2} parent=1 // pred_check
      _
    $region23: #{patch_embed_pallas.2} parent=1 // pred_check_branch
      %365 = sbr.rel (0) target = $region25
    $region24: #{patch_embed_pallas.2} parent=1 // pred_region
      _
    $region25: #{patch_embed_pallas.2} parent=1 // pred_fallthru
      _
    // Predicated region
    $region26: #{patch_embed_pallas.2} parent=1 // pred_check
      _
    $region27: #{patch_embed_pallas.2} parent=1 // pred_check_branch
      %367 = sbr.rel (0) target = $region29
    $region28: #{patch_embed_pallas.2} parent=1 // pred_region
      _
    $region29: #{patch_embed_pallas.2} parent=1 // pred_fallthru
      _

</llo_original>
